<compile_context>
chip_gen: v7x
topology: tpu7x:2x2x1
jax: 0.10.0
libtpu: 0.0.40
codegen_flags: <defaults>
</compile_context>

<pallas_src>
import jax
import jax.numpy as jnp
from jax.experimental import pallas as pl
from jax.experimental.pallas import tpu as pltpu

LANE = 128  # TPU lane width; branch outputs are padded to a multiple of this.


# ----------------------------------------------------------------------------
# Fused kernel: backbone (1x1 conv + ReLU + global avg pool) + all branch heads
# ----------------------------------------------------------------------------
def _fused_kernel(x_ref, wbb_ref, bbb_ref, wbr_ref, bbr_ref, out_ref):
    # x_ref  : (B, C, S)   input, NCHW with H*W flattened onto the lane axis
    # wbb_ref: (F, C)      backbone 1x1-conv weight (out_feat x in_ch)
    # bbb_ref: (F, 1)      backbone bias
    # wbr_ref: (F, NP)     all branch weights, concatenated + zero-padded to NP
    # bbr_ref: (1, NP)     all branch biases,  concatenated + zero-padded to NP
    # out_ref: (B, NP)     concatenated logits (lane-dense padded slab)
    B = x_ref.shape[0]
    S = x_ref.shape[2]
    inv_s = 1.0 / float(S)

    wbb = wbb_ref[...]                                   # (F, C)
    bbb = bbb_ref[...]                                   # (F, 1) -> lane broadcast
    # Mean-pool as an MXU matmul with a constant 1/S vector (no XLU reduce).
    pool = jnp.full((S, 1), inv_s, dtype=jnp.float32)    # (S, 1)

    cols = []
    for b in range(B):  # B is tiny & static -> fully unrolled at trace time
        h = jnp.dot(wbb, x_ref[b], preferred_element_type=jnp.float32)   # (F, S)  MXU
        h = jnp.maximum(h + bbb, 0.0)                                    # bias + ReLU, VPU
        cols.append(jnp.dot(h, pool, preferred_element_type=jnp.float32))  # (F, 1) MXU pool

    cls = jnp.concatenate(cols, axis=1).T                # (B, F) cls_token
    logits = jnp.dot(cls, wbr_ref[...],
                     preferred_element_type=jnp.float32) + bbr_ref[...]  # (B, NP)
    out_ref[...] = logits.astype(out_ref.dtype)


# ----------------------------------------------------------------------------
# CBackboneCBranch forward (single fused pallas_call)
# ----------------------------------------------------------------------------
def c_backbone_c_branch_forward(x_nchw, params):
    """Mirrors CBackboneCBranch.forward: backbone -> per-level branch logits."""
    B, C, H, W = x_nchw.shape
    S = H * W
    x_bcs = x_nchw.reshape(B, C, S)          # free reshape; NO transpose needed

    wbb = params["backbone_w"]               # (F, C)
    bbb = params["backbone_b"]               # (F, 1)
    wbr = params["branch_w_cat"]             # (F, NP)   NP = padded sum(N_i)
    bbr = params["branch_b_cat"]             # (1, NP)
    F = wbb.shape[0]
    NP = wbr.shape[1]

    logits_cat = pl.pallas_call(
        _fused_kernel,
        out_shape=jax.ShapeDtypeStruct((B, NP), jnp.float32),
        grid_spec=pltpu.PrefetchScalarGridSpec(
            num_scalar_prefetch=0,
            grid=(1,),                        # whole problem in one grid step
            in_specs=[
                pl.BlockSpec((B, C, S), lambda i: (0, 0, 0)),
                pl.BlockSpec((F, C), lambda i: (0, 0)),
                pl.BlockSpec((F, 1), lambda i: (0, 0)),
                pl.BlockSpec((F, NP), lambda i: (0, 0)),
                pl.BlockSpec((1, NP), lambda i: (0, 0)),
            ],
            out_specs=pl.BlockSpec((B, NP), lambda i: (0, 0)),
        ),
        compiler_params=pltpu.CompilerParams(
            dimension_semantics=("arbitrary",),   # no cross-core split for tiny work
        ),
    )(x_bcs, wbb, bbb, wbr, bbr)

    # Slice per-level logits in the wrapper (zero-cost vs. lane-dense kernel store).
    branch_outputs = []
    off = 0
    for n_cls in params["num_cls_in_level"]:
        branch_outputs.append(logits_cat[:, off:off + n_cls])
        off += n_cls
    return branch_outputs


# ----------------------------------------------------------------------------
# Deterministic parameter init (synthetic, no checkpoint load)
# ----------------------------------------------------------------------------
def init_params(key, in_ch, feat_dim, num_cls_in_level):
    k_bb, k_bbb, *k_br = jax.random.split(key, 2 + len(num_cls_in_level))
    backbone_w = jax.random.normal(k_bb, (feat_dim, in_ch), jnp.float32) * 0.1   # (F, C)
    backbone_b = jax.random.normal(k_bbb, (feat_dim, 1), jnp.float32) * 0.01     # (F, 1)

    branches = []
    for lvl, (kk, n_cls) in enumerate(zip(k_br, num_cls_in_level)):
        w = jax.random.normal(kk, (feat_dim, n_cls), jnp.float32) * 0.1
        b = jnp.full((1, n_cls), 0.01 * (lvl + 1), jnp.float32)
        branches.append((w, b))

    # Concatenate all branch heads into one lane-padded classifier matrix.
    n_total = sum(num_cls_in_level)
    n_pad = ((n_total + LANE - 1) // LANE) * LANE
    n_pad = max(n_pad, LANE)
    w_cat = jnp.zeros((feat_dim, n_pad), jnp.float32)
    b_cat = jnp.zeros((1, n_pad), jnp.float32)
    off = 0
    for (w, b), n_cls in zip(branches, num_cls_in_level):
        w_cat = w_cat.at[:, off:off + n_cls].set(w)
        b_cat = b_cat.at[:, off:off + n_cls].set(b)
        off += n_cls

    return {
        "backbone_w": backbone_w,
        "backbone_b": backbone_b,
        "branches": branches,           # kept for the reference check
        "branch_w_cat": w_cat,
        "branch_b_cat": b_cat,
        "num_cls_in_level": list(num_cls_in_level),
    }


if __name__ == "__main__":
    # Small, module-consistent shapes
    B, C, H, W = 2, 4, 16, 16
    FEAT_DIM = 32
    NUM_CLS_IN_LEVEL = [4, 8, 16]   # num_levels = 3

    key = jax.random.PRNGKey(0)
    k_x, k_p = jax.random.split(key)

    x = jax.random.normal(k_x, (B, C, H, W), jnp.float32)
    params = init_params(k_p, C, FEAT_DIM, NUM_CLS_IN_LEVEL)

    outputs = c_backbone_c_branch_forward(x, params)
    outputs = [jax.block_until_ready(o) for o in outputs]

    # Pure-JAX reference check (highest precision to isolate kernel error)
    hi = jax.lax.Precision.HIGHEST
    x_bcs = x.reshape(B, C, H * W)
    h_ref = jnp.einsum("fc,bcs->bfs", params["backbone_w"], x_bcs, precision=hi)
    h_ref = jnp.maximum(h_ref + params["backbone_b"][None], 0.0)
    cls_ref = jnp.mean(h_ref, axis=-1)                                   # (B, F)

    ok = True
    for (w_i, b_i), out in zip(params["branches"], outputs):
        ref = jnp.dot(cls_ref, w_i, precision=hi) + b_i
        ok = ok and bool(jnp.allclose(out, ref, atol=1e-4, rtol=1e-4))
        assert out.shape == (B, w_i.shape[1])

    if ok:
        print("KERNEL_OK")
</pallas_src>

<mosaic_0001>
module attributes {stable_mosaic.version = 11 : i64} {
  func.func @_fused_kernel(%arg0: i32, %arg1: memref<2x4x256xf32, #tpu.memory_space<vmem>>, %arg2: memref<32x4xf32, #tpu.memory_space<vmem>>, %arg3: memref<32x1xf32, #tpu.memory_space<vmem>>, %arg4: memref<32x128xf32, #tpu.memory_space<vmem>>, %arg5: memref<1x128xf32, #tpu.memory_space<vmem>>, %arg6: memref<2x128xf32, #tpu.memory_space<vmem>>) attributes {dimension_semantics = [#tpu.dimension_semantics<arbitrary>], iteration_bounds = array<i64: 1>, scalar_prefetch = 0 : i64, scratch_operands = 0 : i64, tpu.core_type = #tpu.core_type<tc>, window_params = [{pipeline_mode = #tpu.pipeline_mode<synchronous>, transform_indices = @transform_0, window_bounds = array<i64: 2, 4, 256>}, {pipeline_mode = #tpu.pipeline_mode<synchronous>, transform_indices = @transform_1, window_bounds = array<i64: 32, 4>}, {pipeline_mode = #tpu.pipeline_mode<synchronous>, transform_indices = @transform_2, window_bounds = array<i64: 32, 1>}, {pipeline_mode = #tpu.pipeline_mode<synchronous>, transform_indices = @transform_3, window_bounds = array<i64: 32, 128>}, {pipeline_mode = #tpu.pipeline_mode<synchronous>, transform_indices = @transform_4, window_bounds = array<i64: 1, 128>}, {pipeline_mode = #tpu.pipeline_mode<synchronous>, transform_indices = @transform_5, window_bounds = array<i64: 2, 128>}]} {
    %c0 = arith.constant 0 : index
    %c0_0 = arith.constant 0 : index
    %0 = vector.load %arg2[%c0, %c0_0] : memref<32x4xf32, #tpu.memory_space<vmem>>, vector<32x4xf32>
    %c0_1 = arith.constant 0 : index
    %c0_2 = arith.constant 0 : index
    %1 = vector.load %arg3[%c0_1, %c0_2] : memref<32x1xf32, #tpu.memory_space<vmem>>, vector<32x1xf32>
    %cst = arith.constant 3.906250e-03 : f32
    %2 = vector.broadcast %cst : f32 to vector<256x1xf32>
    %c0_3 = arith.constant 0 : index
    %c0_4 = arith.constant 0 : index
    %c0_5 = arith.constant 0 : index
    %3 = vector.load %arg1[%c0_3, %c0_4, %c0_5] : memref<2x4x256xf32, #tpu.memory_space<vmem>>, vector<1x4x256xf32>
    %4 = vector.shape_cast %3 : vector<1x4x256xf32> to vector<4x256xf32>
    %cst_6 = arith.constant dense<0.000000e+00> : vector<32x256xf32>
    %5 = tpu.matmul %0, %4, %cst_6 {dimension_numbers = #tpu.dot_dimension_numbers<[1], [0], [0], [1], [0, 0, 1, 1], [], []>} : vector<32x4xf32>, vector<4x256xf32>, vector<32x256xf32> -> vector<32x256xf32>
    %6 = vector.broadcast %1 : vector<32x1xf32> to vector<32x256xf32>
    %7 = arith.addf %5, %6 : vector<32x256xf32>
    %cst_7 = arith.constant 0.000000e+00 : f32
    %8 = vector.broadcast %cst_7 : f32 to vector<32x256xf32>
    %9 = arith.maximumf %7, %8 : vector<32x256xf32>
    %cst_8 = arith.constant dense<0.000000e+00> : vector<32x1xf32>
    %10 = tpu.matmul %9, %2, %cst_8 {dimension_numbers = #tpu.dot_dimension_numbers<[1], [0], [0], [1], [0, 0, 1, 1], [], []>} : vector<32x256xf32>, vector<256x1xf32>, vector<32x1xf32> -> vector<32x1xf32>
    %c1 = arith.constant 1 : index
    %c0_9 = arith.constant 0 : index
    %c0_10 = arith.constant 0 : index
    %11 = vector.load %arg1[%c1, %c0_9, %c0_10] : memref<2x4x256xf32, #tpu.memory_space<vmem>>, vector<1x4x256xf32>
    %12 = vector.shape_cast %11 : vector<1x4x256xf32> to vector<4x256xf32>
    %cst_11 = arith.constant dense<0.000000e+00> : vector<32x256xf32>
    %13 = tpu.matmul %0, %12, %cst_11 {dimension_numbers = #tpu.dot_dimension_numbers<[1], [0], [0], [1], [0, 0, 1, 1], [], []>} : vector<32x4xf32>, vector<4x256xf32>, vector<32x256xf32> -> vector<32x256xf32>
    %14 = vector.broadcast %1 : vector<32x1xf32> to vector<32x256xf32>
    %15 = arith.addf %13, %14 : vector<32x256xf32>
    %cst_12 = arith.constant 0.000000e+00 : f32
    %16 = vector.broadcast %cst_12 : f32 to vector<32x256xf32>
    %17 = arith.maximumf %15, %16 : vector<32x256xf32>
    %cst_13 = arith.constant dense<0.000000e+00> : vector<32x1xf32>
    %18 = tpu.matmul %17, %2, %cst_13 {dimension_numbers = #tpu.dot_dimension_numbers<[1], [0], [0], [1], [0, 0, 1, 1], [], []>} : vector<32x256xf32>, vector<256x1xf32>, vector<32x1xf32> -> vector<32x1xf32>
    %19 = tpu.concatenate %10, %18 in 1 : vector<32x1xf32>, vector<32x1xf32> -> vector<32x2xf32>
    %20 = tpu.transpose %19, [1, 0] : vector<32x2xf32> -> vector<2x32xf32>
    %c0_14 = arith.constant 0 : index
    %c0_15 = arith.constant 0 : index
    %21 = vector.load %arg4[%c0_14, %c0_15] : memref<32x128xf32, #tpu.memory_space<vmem>>, vector<32x128xf32>
    %cst_16 = arith.constant dense<0.000000e+00> : vector<2x128xf32>
    %22 = tpu.matmul %20, %21, %cst_16 {dimension_numbers = #tpu.dot_dimension_numbers<[1], [0], [0], [1], [0, 0, 1, 1], [], []>} : vector<2x32xf32>, vector<32x128xf32>, vector<2x128xf32> -> vector<2x128xf32>
    %c0_17 = arith.constant 0 : index
    %c0_18 = arith.constant 0 : index
    %23 = vector.load %arg5[%c0_17, %c0_18] : memref<1x128xf32, #tpu.memory_space<vmem>>, vector<1x128xf32>
    %24 = vector.broadcast %23 : vector<1x128xf32> to vector<2x128xf32>
    %25 = arith.addf %22, %24 : vector<2x128xf32>
    %c0_19 = arith.constant 0 : index
    %c0_20 = arith.constant 0 : index
    %26 = vector.load %arg6[%c0_19, %c0_20] : memref<2x128xf32, #tpu.memory_space<vmem>>, vector<2x128xf32>
    tpu.vector_store %arg6[%c0_19, %c0_20], %25 {strides = array<i32>} : memref<2x128xf32, #tpu.memory_space<vmem>>, vector<2x128xf32>,
    return
  }
  func.func @transform_0(%arg0: i32) -> (i32, i32, i32) {
    %c0_i32 = arith.constant 0 : i32
    %c0_i32_0 = arith.constant 0 : i32
    %c0_i32_1 = arith.constant 0 : i32
    %c0_i32_2 = arith.constant 0 : i32
    return %c0_i32, %c0_i32_0, %c0_i32_1 : i32, i32, i32
  }
  func.func @transform_1(%arg0: i32) -> (i32, i32) {
    %c0_i32 = arith.constant 0 : i32
    %c0_i32_0 = arith.constant 0 : i32
    %c0_i32_1 = arith.constant 0 : i32
    return %c0_i32, %c0_i32_0 : i32, i32
  }
  func.func @transform_2(%arg0: i32) -> (i32, i32) {
    %c0_i32 = arith.constant 0 : i32
    %c0_i32_0 = arith.constant 0 : i32
    %c0_i32_1 = arith.constant 0 : i32
    return %c0_i32, %c0_i32_0 : i32, i32
  }
  func.func @transform_3(%arg0: i32) -> (i32, i32) {
    %c0_i32 = arith.constant 0 : i32
    %c0_i32_0 = arith.constant 0 : i32
    %c0_i32_1 = arith.constant 0 : i32
    return %c0_i32, %c0_i32_0 : i32, i32
  }
  func.func @transform_4(%arg0: i32) -> (i32, i32) {
    %c0_i32 = arith.constant 0 : i32
    %c0_i32_0 = arith.constant 0 : i32
    %c0_i32_1 = arith.constant 0 : i32
    return %c0_i32, %c0_i32_0 : i32, i32
  }
  func.func @transform_5(%arg0: i32) -> (i32, i32) {
    %c0_i32 = arith.constant 0 : i32
    %c0_i32_0 = arith.constant 0 : i32
    %c0_i32_1 = arith.constant 0 : i32
    return %c0_i32, %c0_i32_0 : i32, i32
  }
}

</mosaic_0001>

<llo_original>
// kernel: tpu_custom_call.1
$region0: #{tpu_custom_call.1}
  #allocation0 [shape = 'u32[]', space=smem, size = 0x4, offset = 0x4, fixed_abs, tag = 'smem constant byte address 0x4 - core index']
  #allocation1 [shape = 'u32[144,128]{1,0:T(1,128)}', space=vmem, size = 0x12000, scoped, tag = 'internal scratch']
  %s0 = inlined_call_operand.vmem [shape: f32[2,4,256], index: 0, kind: input, shape index: {}]
  %s1 = inlined_call_operand.vmem [shape: f32[32,4], index: 1, kind: input, shape index: {}]
  %s2 = inlined_call_operand.vmem [shape: f32[32,1], index: 2, kind: input, shape index: {}]
  %s3 = inlined_call_operand.vmem [shape: f32[32,128], index: 3, kind: input, shape index: {}]
  %s4 = inlined_call_operand.vmem [shape: f32[1,128], index: 4, kind: input, shape index: {}]
  %s5 = inlined_call_operand.hbm [shape: f32[2,128], index: 5, kind: output, shape index: {}]
  %s6 = sld [smem:[#allocation0]]
  $region30: #{tpu_custom_call.1} parent=0
    _
  %s8 = ssub.s32 1, %s6
  %s9 = scalar_select 0, %s8, %s6
  $region1: #{tpu_custom_call.1} parent=0
    #allocation2 [shape = 'u8[1024]{0}', space=vmem, size = 0x400, scoped, tag = 'output window, operand 0, single buffered']
    #allocation3 [shape = 's32[1]{0}', space=sflag, size = 0x4, scoped, tag = 'scoped memory for tpu_custom_call.1']
    %10 = vsyncpa [#allocation3], 0
    // Predicated region
    $region2: #{tpu_custom_call.1} parent=1 // pred_check
      _
    $region3: #{tpu_custom_call.1} parent=1 // pred_check_branch
      %12 = sbr.rel (0) target = $region5
    $region4: #{tpu_custom_call.1} parent=1 // pred_region
      _
    $region5: #{tpu_custom_call.1} parent=1 // pred_fallthru
      _
    // Predicated region
    $region6: #{tpu_custom_call.1} parent=1 // pred_check
      _
    $region7: #{tpu_custom_call.1} parent=1 // pred_check_branch
      %14 = sbr.rel (0) target = $region9
    $region8: #{tpu_custom_call.1} parent=1 // pred_region
      _
    $region9: #{tpu_custom_call.1} parent=1 // pred_fallthru
      _
    // Predicated region
    $region10: #{tpu_custom_call.1} parent=1 // pred_check
      _
    $region11: #{tpu_custom_call.1} parent=1 // pred_check_branch
      %16 = sbr.rel (0) target = $region13
    $region12: #{tpu_custom_call.1} parent=1 // pred_region
      _
    $region13: #{tpu_custom_call.1} parent=1 // pred_fallthru
      _
    // Predicated region
    $region14: #{tpu_custom_call.1} parent=1 // pred_check
      _
    $region15: #{tpu_custom_call.1} parent=1 // pred_check_branch
      %18 = sbr.rel (0) target = $region17
    $region16: #{tpu_custom_call.1} parent=1 // pred_region
      _
    $region17: #{tpu_custom_call.1} parent=1 // pred_fallthru
      _
    // Predicated region
    $region18: #{tpu_custom_call.1} parent=1 // pred_check
      _
    $region19: #{tpu_custom_call.1} parent=1 // pred_check_branch
      %20 = sbr.rel (0) target = $region21
    $region20: #{tpu_custom_call.1} parent=1 // pred_region
      _
    $region21: #{tpu_custom_call.1} parent=1 // pred_fallthru
      _
    %v21 = vld [vmem:[%s1] sm:$0xff]
    %v22 = vld [vmem:[%s1 + $0x8] sm:$0xff]
    %v23 = vld [vmem:[%s1 + $0x10] sm:$0xff]
    %v24 = vld [vmem:[%s1 + $0x18] sm:$0xff]
    %v25 = vld [vmem:[%s2] sm:$0xff]
    %v26 = vld [vmem:[%s2 + $0x8] sm:$0xff]
    %v27 = vld [vmem:[%s2 + $0x10] sm:$0xff]
    %v28 = vld [vmem:[%s2 + $0x18] sm:$0xff]
    %v29 = vld [vmem:[%s0] sm:$0xff]
    %31 = vset.pattern.permute.xlu0 0
    %32 = vperm.xlu0 %31, %v25
    %v33 = vpop.permute.xlu0 %32
    %36 = vset.pattern.permute.xlu0 0
    %37 = vperm.xlu0 %36, %v26
    %v38 = vpop.permute.xlu0 %37
    %41 = vset.pattern.permute.xlu0 0
    %42 = vperm.xlu0 %41, %v27
    %v43 = vpop.permute.xlu0 %42
    %46 = vset.pattern.permute.xlu0 0
    %47 = vperm.xlu0 %46, %v28
    %v48 = vpop.permute.xlu0 %47
    %v51 = vcombine.high %v29, %v29
    %vm52 = vcmask 31744
    %v54 = vsel %vm52, %v21, 0
    %v57 = vsel %vm52, %v22, 0
    %v60 = vsel %vm52, %v23, 0
    %v63 = vsel %vm52, %v24, 0
    %vm65 = vcmask 1043456
    %v66 = vsel %vm65, %v29, 0
    %v68 = vsel %vm65, %v51, 0
    %70 = vmatprep.subr.mxu0 %v68
    %71 = vmatpush1.msra.mxu0 %v66
    %72 = vmatprep.subr.mxu0 0.0
    %73 = vmatpush1.msra.mxu0 0.0
    %74 = vmatprep.subr.mxu0 0.0
    %75 = vmatpush1.msra.mxu0 0.0
    %76 = vmatprep.subr.mxu0 0.0
    %77 = vmatpush1.msra.mxu0 0.0
    %78 = vmatprep.subr.mxu0 0.0
    %79 = vmatpush1.msra.mxu0 0.0
    %80 = vmatprep.subr.mxu0 0.0
    %81 = vmatpush1.msra.mxu0 0.0
    %82 = vmatprep.subr.mxu0 0.0
    %83 = vmatpush1.msra.mxu0 0.0
    %84 = vmatprep.subr.mxu0 0.0
    %85 = vmatpush1.msra.mxu0 0.0
    %86 = vmatprep.subr.mxu0 0.0
    %87 = vmatpush1.msra.mxu0 0.0
    %88 = vmatprep.subr.mxu0 0.0
    %89 = vmatpush1.msra.mxu0 0.0
    %90 = vmatprep.subr.mxu0 0.0
    %91 = vmatpush1.msra.mxu0 0.0
    %92 = vmatprep.subr.mxu0 0.0
    %93 = vmatpush1.msra.mxu0 0.0
    %94 = vmatprep.subr.mxu0 0.0
    %95 = vmatpush1.msra.mxu0 0.0
    %96 = vmatprep.subr.mxu0 0.0
    %97 = vmatpush1.msra.mxu0 0.0
    %98 = vmatprep.subr.mxu0 0.0
    %99 = vmatpush1.msra.mxu0 0.0
    %100 = vmatprep.subr.mxu0 0.0
    %101 = vmatpush1.msra.mxu0 0.0
    %102 = vmatprep.subr.mxu0 0.0
    %103 = vmatpush1.msra.mxu0 0.0
    %104 = vmatprep.subr.mxu0 0.0
    %105 = vmatpush1.msra.mxu0 0.0
    %106 = vmatprep.subr.mxu0 0.0
    %107 = vmatpush1.msra.mxu0 0.0
    %108 = vmatprep.subr.mxu0 0.0
    %109 = vmatpush1.msra.mxu0 0.0
    %110 = vmatprep.subr.mxu0 0.0
    %111 = vmatpush1.msra.mxu0 0.0
    %112 = vmatprep.subr.mxu0 0.0
    %113 = vmatpush1.msra.mxu0 0.0
    %114 = vmatprep.subr.mxu0 0.0
    %115 = vmatpush1.msra.mxu0 0.0
    %116 = vmatprep.subr.mxu0 0.0
    %117 = vmatpush1.msra.mxu0 0.0
    %118 = vmatprep.subr.mxu0 0.0
    %119 = vmatpush1.msra.mxu0 0.0
    %120 = vmatprep.subr.mxu0 0.0
    %121 = vmatpush1.msra.mxu0 0.0
    %122 = vmatprep.subr.mxu0 0.0
    %123 = vmatpush1.msra.mxu0 0.0
    %124 = vmatprep.subr.mxu0 0.0
    %125 = vmatpush1.msra.mxu0 0.0
    %126 = vmatprep.subr.mxu0 0.0
    %127 = vmatpush1.msra.mxu0 0.0
    %128 = vmatprep.subr.mxu0 0.0
    %129 = vmatpush1.msra.mxu0 0.0
    %130 = vmatprep.subr.mxu0 0.0
    %131 = vmatpush1.msra.mxu0 0.0
    %132 = vmatprep.subr.mxu0 0.0
    %133 = vmatpush1.msra.mxu0 0.0
    %134 = vmatprep.mubr.f32.mxu0 0.0
    %135 = vmatmul.mubr.f32.gmra.mrb[0].mxu0 %v54
    %v136 = vpop.f32.mrb[0].mxu0
    %v137 = vadd.f32 %v33, %v136
    %v138 = vpop.f32.mrb[0].mxu0
    %v139 = vadd.f32 %v33, %v138
    %140 = vmatprep.mubr.f32.mxu0 0.0
    %141 = vmatmul.mubr.f32.gmra.mrb[0].mxu0 %v57
    %v142 = vpop.f32.mrb[0].mxu0
    %v143 = vadd.f32 %v38, %v142
    %v144 = vpop.f32.mrb[0].mxu0
    %v145 = vadd.f32 %v38, %v144
    %146 = vmatprep.mubr.f32.mxu0 0.0
    %147 = vmatmul.mubr.f32.gmra.mrb[0].mxu0 %v60
    %v148 = vpop.f32.mrb[0].mxu0
    %v149 = vadd.f32 %v43, %v148
    %v150 = vpop.f32.mrb[0].mxu0
    %v151 = vadd.f32 %v43, %v150
    %152 = vmatprep.mubr.f32.mxu0 0.0
    %153 = vmatmul.mubr.f32.gmra.mrb[0].mxu0 %v63
    %v154 = vpop.f32.mrb[0].mxu0
    %v155 = vadd.f32 %v48, %v154
    %v156 = vpop.f32.mrb[0].mxu0
    %v157 = vadd.f32 %v48, %v156
    %158 = vdwg.mxu0
    %v159 = vmax.f32 %v137, 0.0
    %v160 = vmax.f32 %v139, 0.0
    %v161 = vmax.f32 %v143, 0.0
    %v162 = vmax.f32 %v145, 0.0
    %v163 = vmax.f32 %v149, 0.0
    %v164 = vmax.f32 %v151, 0.0
    %v165 = vmax.f32 %v155, 0.0
    %v166 = vmax.f32 %v157, 0.0
    %167 = vmatprep.subr.mxu0 0.0
    %168 = vmatpush1.msra.mxu0 0.00390625
    %169 = vmatprep.subr.mxu0 0.0
    %170 = vmatpush1.msra.mxu0 0.00390625
    %171 = vmatprep.subr.mxu0 0.0
    %172 = vmatpush1.msra.mxu0 0.00390625
    %173 = vmatprep.subr.mxu0 0.0
    %174 = vmatpush1.msra.mxu0 0.00390625
    %175 = vmatprep.subr.mxu0 0.0
    %176 = vmatpush1.msra.mxu0 0.00390625
    %177 = vmatprep.subr.mxu0 0.0
    %178 = vmatpush1.msra.mxu0 0.00390625
    %179 = vmatprep.subr.mxu0 0.0
    %180 = vmatpush1.msra.mxu0 0.00390625
    %181 = vmatprep.subr.mxu0 0.0
    %182 = vmatpush1.msra.mxu0 0.00390625
    %183 = vmatprep.subr.mxu0 0.0
    %184 = vmatpush1.msra.mxu0 0.00390625
    %185 = vmatprep.subr.mxu0 0.0
    %186 = vmatpush1.msra.mxu0 0.00390625
    %187 = vmatprep.subr.mxu0 0.0
    %188 = vmatpush1.msra.mxu0 0.00390625
    %189 = vmatprep.subr.mxu0 0.0
    %190 = vmatpush1.msra.mxu0 0.00390625
    %191 = vmatprep.subr.mxu0 0.0
    %192 = vmatpush1.msra.mxu0 0.00390625
    %193 = vmatprep.subr.mxu0 0.0
    %194 = vmatpush1.msra.mxu0 0.00390625
    %195 = vmatprep.subr.mxu0 0.0
    %196 = vmatpush1.msra.mxu0 0.00390625
    %197 = vmatprep.subr.mxu0 0.0
    %198 = vmatpush1.msra.mxu0 0.00390625
    %199 = vmatprep.subr.mxu0 0.0
    %200 = vmatpush1.msra.mxu0 0.00390625
    %201 = vmatprep.subr.mxu0 0.0
    %202 = vmatpush1.msra.mxu0 0.00390625
    %203 = vmatprep.subr.mxu0 0.0
    %204 = vmatpush1.msra.mxu0 0.00390625
    %205 = vmatprep.subr.mxu0 0.0
    %206 = vmatpush1.msra.mxu0 0.00390625
    %207 = vmatprep.subr.mxu0 0.0
    %208 = vmatpush1.msra.mxu0 0.00390625
    %209 = vmatprep.subr.mxu0 0.0
    %210 = vmatpush1.msra.mxu0 0.00390625
    %211 = vmatprep.subr.mxu0 0.0
    %212 = vmatpush1.msra.mxu0 0.00390625
    %213 = vmatprep.subr.mxu0 0.0
    %214 = vmatpush1.msra.mxu0 0.00390625
    %215 = vmatprep.subr.mxu0 0.0
    %216 = vmatpush1.msra.mxu0 0.00390625
    %217 = vmatprep.subr.mxu0 0.0
    %218 = vmatpush1.msra.mxu0 0.00390625
    %219 = vmatprep.subr.mxu0 0.0
    %220 = vmatpush1.msra.mxu0 0.00390625
    %221 = vmatprep.subr.mxu0 0.0
    %222 = vmatpush1.msra.mxu0 0.00390625
    %223 = vmatprep.subr.mxu0 0.0
    %224 = vmatpush1.msra.mxu0 0.00390625
    %225 = vmatprep.subr.mxu0 0.0
    %226 = vmatpush1.msra.mxu0 0.00390625
    %227 = vmatprep.subr.mxu0 0.0
    %228 = vmatpush1.msra.mxu0 0.00390625
    %229 = vmatprep.subr.mxu0 0.0
    %230 = vmatpush1.msra.mxu0 0.00390625
    %231 = vmatprep.mubr.f32.mxu0 %v160
    %232 = vmatmul.mubr.f32.gmra.mrb[0].mxu0 %v159
    %v233 = vpop.f32.mrb[0].mxu0
    %v234 = vadd.f32 0.0, %v233
    %v235 = vpop.f32.mrb[0].mxu0
    %236 = vmatprep.mubr.f32.mxu0 %v162
    %237 = vmatmul.mubr.f32.gmra.mrb[0].mxu0 %v161
    %v238 = vpop.f32.mrb[0].mxu0
    %v239 = vadd.f32 0.0, %v238
    %v240 = vpop.f32.mrb[0].mxu0
    %241 = vmatprep.mubr.f32.mxu0 %v164
    %242 = vmatmul.mubr.f32.gmra.mrb[0].mxu0 %v163
    %v243 = vpop.f32.mrb[0].mxu0
    %v244 = vadd.f32 0.0, %v243
    %v245 = vpop.f32.mrb[0].mxu0
    %246 = vmatprep.mubr.f32.mxu0 %v166
    %247 = vmatmul.mubr.f32.gmra.mrb[0].mxu0 %v165
    %v248 = vpop.f32.mrb[0].mxu0
    %v249 = vadd.f32 0.0, %v248
    %v250 = vpop.f32.mrb[0].mxu0
    %251 = vdwg.mxu0
    %s252 = scalar_lea.vmem %s0, 8
    %v253 = vld [vmem:[%s252] sm:$0xff]
    %v255 = vcombine.high %v253, %v253
    %v256 = vsel %vm65, %v253, 0
    %v258 = vsel %vm65, %v255, 0
    %260 = vmatprep.subr.mxu0 %v258
    %261 = vmatpush1.msra.mxu0 %v256
    %262 = vmatprep.subr.mxu0 0.0
    %263 = vmatpush1.msra.mxu0 0.0
    %264 = vmatprep.subr.mxu0 0.0
    %265 = vmatpush1.msra.mxu0 0.0
    %266 = vmatprep.subr.mxu0 0.0
    %267 = vmatpush1.msra.mxu0 0.0
    %268 = vmatprep.subr.mxu0 0.0
    %269 = vmatpush1.msra.mxu0 0.0
    %270 = vmatprep.subr.mxu0 0.0
    %271 = vmatpush1.msra.mxu0 0.0
    %272 = vmatprep.subr.mxu0 0.0
    %273 = vmatpush1.msra.mxu0 0.0
    %274 = vmatprep.subr.mxu0 0.0
    %275 = vmatpush1.msra.mxu0 0.0
    %276 = vmatprep.subr.mxu0 0.0
    %277 = vmatpush1.msra.mxu0 0.0
    %278 = vmatprep.subr.mxu0 0.0
    %279 = vmatpush1.msra.mxu0 0.0
    %280 = vmatprep.subr.mxu0 0.0
    %281 = vmatpush1.msra.mxu0 0.0
    %282 = vmatprep.subr.mxu0 0.0
    %283 = vmatpush1.msra.mxu0 0.0
    %284 = vmatprep.subr.mxu0 0.0
    %285 = vmatpush1.msra.mxu0 0.0
    %286 = vmatprep.subr.mxu0 0.0
    %287 = vmatpush1.msra.mxu0 0.0
    %288 = vmatprep.subr.mxu0 0.0
    %289 = vmatpush1.msra.mxu0 0.0
    %290 = vmatprep.subr.mxu0 0.0
    %291 = vmatpush1.msra.mxu0 0.0
    %292 = vmatprep.subr.mxu0 0.0
    %293 = vmatpush1.msra.mxu0 0.0
    %294 = vmatprep.subr.mxu0 0.0
    %295 = vmatpush1.msra.mxu0 0.0
    %296 = vmatprep.subr.mxu0 0.0
    %297 = vmatpush1.msra.mxu0 0.0
    %298 = vmatprep.subr.mxu0 0.0
    %299 = vmatpush1.msra.mxu0 0.0
    %300 = vmatprep.subr.mxu0 0.0
    %301 = vmatpush1.msra.mxu0 0.0
    %302 = vmatprep.subr.mxu0 0.0
    %303 = vmatpush1.msra.mxu0 0.0
    %304 = vmatprep.subr.mxu0 0.0
    %305 = vmatpush1.msra.mxu0 0.0
    %306 = vmatprep.subr.mxu0 0.0
    %307 = vmatpush1.msra.mxu0 0.0
    %308 = vmatprep.subr.mxu0 0.0
    %309 = vmatpush1.msra.mxu0 0.0
    %310 = vmatprep.subr.mxu0 0.0
    %311 = vmatpush1.msra.mxu0 0.0
    %312 = vmatprep.subr.mxu0 0.0
    %313 = vmatpush1.msra.mxu0 0.0
    %314 = vmatprep.subr.mxu0 0.0
    %315 = vmatpush1.msra.mxu0 0.0
    %316 = vmatprep.subr.mxu0 0.0
    %317 = vmatpush1.msra.mxu0 0.0
    %318 = vmatprep.subr.mxu0 0.0
    %319 = vmatpush1.msra.mxu0 0.0
    %320 = vmatprep.subr.mxu0 0.0
    %321 = vmatpush1.msra.mxu0 0.0
    %322 = vmatprep.subr.mxu0 0.0
    %323 = vmatpush1.msra.mxu0 0.0
    %324 = vmatprep.mubr.f32.mxu0 0.0
    %325 = vmatmul.mubr.f32.gmra.mrb[0].mxu0 %v54
    %v326 = vpop.f32.mrb[0].mxu0
    %v327 = vadd.f32 %v33, %v326
    %v328 = vpop.f32.mrb[0].mxu0
    %v329 = vadd.f32 %v33, %v328
    %330 = vmatprep.mubr.f32.mxu0 0.0
    %331 = vmatmul.mubr.f32.gmra.mrb[0].mxu0 %v57
    %v332 = vpop.f32.mrb[0].mxu0
    %v333 = vadd.f32 %v38, %v332
    %v334 = vpop.f32.mrb[0].mxu0
    %v335 = vadd.f32 %v38, %v334
    %336 = vmatprep.mubr.f32.mxu0 0.0
    %337 = vmatmul.mubr.f32.gmra.mrb[0].mxu0 %v60
    %v338 = vpop.f32.mrb[0].mxu0
    %v339 = vadd.f32 %v43, %v338
    %v340 = vpop.f32.mrb[0].mxu0
    %v341 = vadd.f32 %v43, %v340
    %342 = vmatprep.mubr.f32.mxu0 0.0
    %343 = vmatmul.mubr.f32.gmra.mrb[0].mxu0 %v63
    %v344 = vpop.f32.mrb[0].mxu0
    %v345 = vadd.f32 %v48, %v344
    %v346 = vpop.f32.mrb[0].mxu0
    %v347 = vadd.f32 %v48, %v346
    %348 = vdwg.mxu0
    %v349 = vmax.f32 %v327, 0.0
    %v350 = vmax.f32 %v329, 0.0
    %v351 = vmax.f32 %v333, 0.0
    %v352 = vmax.f32 %v335, 0.0
    %v353 = vmax.f32 %v339, 0.0
    %v354 = vmax.f32 %v341, 0.0
    %v355 = vmax.f32 %v345, 0.0
    %v356 = vmax.f32 %v347, 0.0
    %357 = vmatprep.subr.mxu0 0.0
    %358 = vmatpush1.msra.mxu0 0.00390625
    %359 = vmatprep.subr.mxu0 0.0
    %360 = vmatpush1.msra.mxu0 0.00390625
    %361 = vmatprep.subr.mxu0 0.0
    %362 = vmatpush1.msra.mxu0 0.00390625
    %363 = vmatprep.subr.mxu0 0.0
    %364 = vmatpush1.msra.mxu0 0.00390625
    %365 = vmatprep.subr.mxu0 0.0
    %366 = vmatpush1.msra.mxu0 0.00390625
    %367 = vmatprep.subr.mxu0 0.0
    %368 = vmatpush1.msra.mxu0 0.00390625
    %369 = vmatprep.subr.mxu0 0.0
    %370 = vmatpush1.msra.mxu0 0.00390625
    %371 = vmatprep.subr.mxu0 0.0
    %372 = vmatpush1.msra.mxu0 0.00390625
    %373 = vmatprep.subr.mxu0 0.0
    %374 = vmatpush1.msra.mxu0 0.00390625
    %375 = vmatprep.subr.mxu0 0.0
    %376 = vmatpush1.msra.mxu0 0.00390625
    %377 = vmatprep.subr.mxu0 0.0
    %378 = vmatpush1.msra.mxu0 0.00390625
    %379 = vmatprep.subr.mxu0 0.0
    %380 = vmatpush1.msra.mxu0 0.00390625
    %381 = vmatprep.subr.mxu0 0.0
    %382 = vmatpush1.msra.mxu0 0.00390625
    %383 = vmatprep.subr.mxu0 0.0
    %384 = vmatpush1.msra.mxu0 0.00390625
    %385 = vmatprep.subr.mxu0 0.0
    %386 = vmatpush1.msra.mxu0 0.00390625
    %387 = vmatprep.subr.mxu0 0.0
    %388 = vmatpush1.msra.mxu0 0.00390625
    %389 = vmatprep.subr.mxu0 0.0
    %390 = vmatpush1.msra.mxu0 0.00390625
    %391 = vmatprep.subr.mxu0 0.0
    %392 = vmatpush1.msra.mxu0 0.00390625
    %393 = vmatprep.subr.mxu0 0.0
    %394 = vmatpush1.msra.mxu0 0.00390625
    %395 = vmatprep.subr.mxu0 0.0
    %396 = vmatpush1.msra.mxu0 0.00390625
    %397 = vmatprep.subr.mxu0 0.0
    %398 = vmatpush1.msra.mxu0 0.00390625
    %399 = vmatprep.subr.mxu0 0.0
    %400 = vmatpush1.msra.mxu0 0.00390625
    %401 = vmatprep.subr.mxu0 0.0
    %402 = vmatpush1.msra.mxu0 0.00390625
    %403 = vmatprep.subr.mxu0 0.0
    %404 = vmatpush1.msra.mxu0 0.00390625
    %405 = vmatprep.subr.mxu0 0.0
    %406 = vmatpush1.msra.mxu0 0.00390625
    %407 = vmatprep.subr.mxu0 0.0
    %408 = vmatpush1.msra.mxu0 0.00390625
    %409 = vmatprep.subr.mxu0 0.0
    %410 = vmatpush1.msra.mxu0 0.00390625
    %411 = vmatprep.subr.mxu0 0.0
    %412 = vmatpush1.msra.mxu0 0.00390625
    %413 = vmatprep.subr.mxu0 0.0
    %414 = vmatpush1.msra.mxu0 0.00390625
    %415 = vmatprep.subr.mxu0 0.0
    %416 = vmatpush1.msra.mxu0 0.00390625
    %417 = vmatprep.subr.mxu0 0.0
    %418 = vmatpush1.msra.mxu0 0.00390625
    %419 = vmatprep.subr.mxu0 0.0
    %420 = vmatpush1.msra.mxu0 0.00390625
    %421 = vmatprep.mubr.f32.mxu0 %v350
    %422 = vmatmul.mubr.f32.gmra.mrb[0].mxu0 %v349
    %v423 = vpop.f32.mrb[0].mxu0
    %v424 = vadd.f32 0.0, %v423
    %v425 = vpop.f32.mrb[0].mxu0
    %426 = vmatprep.mubr.f32.mxu0 %v352
    %427 = vmatmul.mubr.f32.gmra.mrb[0].mxu0 %v351
    %v428 = vpop.f32.mrb[0].mxu0
    %v429 = vadd.f32 0.0, %v428
    %v430 = vpop.f32.mrb[0].mxu0
    %431 = vmatprep.mubr.f32.mxu0 %v354
    %432 = vmatmul.mubr.f32.gmra.mrb[0].mxu0 %v353
    %v433 = vpop.f32.mrb[0].mxu0
    %v434 = vadd.f32 0.0, %v433
    %v435 = vpop.f32.mrb[0].mxu0
    %436 = vmatprep.mubr.f32.mxu0 %v356
    %437 = vmatmul.mubr.f32.gmra.mrb[0].mxu0 %v355
    %v438 = vpop.f32.mrb[0].mxu0
    %v439 = vadd.f32 0.0, %v438
    %v440 = vpop.f32.mrb[0].mxu0
    %441 = vdwg.mxu0
    %446 = vrot.lane.b32.xlu0 %v424, 1
    %v447 = vpop.permute.xlu0 %446
    %448 = vrot.lane.b32.xlu0 %v429, 1
    %v449 = vpop.permute.xlu0 %448
    %450 = vrot.lane.b32.xlu0 %v434, 1
    %v451 = vpop.permute.xlu0 %450
    %452 = vrot.lane.b32.xlu0 %v439, 1
    %v453 = vpop.permute.xlu0 %452
    %vm458 = vcmask 7168
    %v459 = vsel %vm458, %v234, %v447
    %v460 = vsel %vm458, %v239, %v449
    %v461 = vsel %vm458, %v244, %v451
    %v462 = vsel %vm458, %v249, %v453
    %463 = vxpose.xlu0.b32.start [1/16] %v459, 128
    %464 = vxpose.xlu0.b32.cont [2/16] %v460, 128
    %465 = vxpose.xlu0.b32.cont [3/16] %v461, 128
    %466 = vxpose.xlu0.b32.cont [4/16] %v462, 128
    %467 = vxpose.xlu0.b32.cont [5/16] 0.0, 128
    %468 = vxpose.xlu0.b32.cont [6/16] 0.0, 128
    %469 = vxpose.xlu0.b32.cont [7/16] 0.0, 128
    %470 = vxpose.xlu0.b32.cont [8/16] 0.0, 128
    %471 = vxpose.xlu0.b32.cont [9/16] 0.0, 128
    %472 = vxpose.xlu0.b32.cont [10/16] 0.0, 128
    %473 = vxpose.xlu0.b32.cont [11/16] 0.0, 128
    %474 = vxpose.xlu0.b32.cont [12/16] 0.0, 128
    %475 = vxpose.xlu0.b32.cont [13/16] 0.0, 128
    %476 = vxpose.xlu0.b32.cont [14/16] 0.0, 128
    %477 = vxpose.xlu0.b32.cont [15/16] 0.0, 128
    %478 = vxpose.xlu0.b32.end [16/16] 0.0, 128
    %v479 = vpop.trf.xlu0
    %v480 = vpop.trf.xlu0
    %v481 = vpop.trf.xlu0
    %v482 = vpop.trf.xlu0
    %v483 = vpop.trf.xlu0
    %v484 = vpop.trf.xlu0
    %v485 = vpop.trf.xlu0
    %v486 = vpop.trf.xlu0
    %v487 = vpop.trf.xlu0
    %v488 = vpop.trf.xlu0
    %v489 = vpop.trf.xlu0
    %v490 = vpop.trf.xlu0
    %v491 = vpop.trf.xlu0
    %v492 = vpop.trf.xlu0
    %v493 = vpop.trf.xlu0
    %v494 = vpop.trf.xlu0
    %v495 = vld [vmem:[%s3] sm:$0xff]
    %v496 = vld [vmem:[%s3 + $0x8] sm:$0xff]
    %v497 = vld [vmem:[%s3 + $0x10] sm:$0xff]
    %v498 = vld [vmem:[%s3 + $0x18] sm:$0xff]
    %v499 = vld [vmem:[%s4] sm:$0x1]
    %v501 = vlaneseq
    %v502 = vshrl.u32 %v501, 7
    %v503 = vsub.s32 0, %v502
    %v504 = vrot.slane %v499, %v503
    %vm506 = vcmask 261120
    %v508 = vsel %vm506, %v479, 0
    %510 = vmatprep.subr.mxu0 0.0
    %511 = vmatpush1.msra.mxu0 %v495
    %512 = vmatprep.subr.mxu0 0.0
    %513 = vmatpush1.msra.mxu0 %v496
    %514 = vmatprep.subr.mxu0 0.0
    %515 = vmatpush1.msra.mxu0 %v497
    %516 = vmatprep.subr.mxu0 0.0
    %517 = vmatpush1.msra.mxu0 %v498
    %518 = vmatprep.subr.mxu0 0.0
    %519 = vmatpush1.msra.mxu0 0.0
    %520 = vmatprep.subr.mxu0 0.0
    %521 = vmatpush1.msra.mxu0 0.0
    %522 = vmatprep.subr.mxu0 0.0
    %523 = vmatpush1.msra.mxu0 0.0
    %524 = vmatprep.subr.mxu0 0.0
    %525 = vmatpush1.msra.mxu0 0.0
    %526 = vmatprep.subr.mxu0 0.0
    %527 = vmatpush1.msra.mxu0 0.0
    %528 = vmatprep.subr.mxu0 0.0
    %529 = vmatpush1.msra.mxu0 0.0
    %530 = vmatprep.subr.mxu0 0.0
    %531 = vmatpush1.msra.mxu0 0.0
    %532 = vmatprep.subr.mxu0 0.0
    %533 = vmatpush1.msra.mxu0 0.0
    %534 = vmatprep.subr.mxu0 0.0
    %535 = vmatpush1.msra.mxu0 0.0
    %536 = vmatprep.subr.mxu0 0.0
    %537 = vmatpush1.msra.mxu0 0.0
    %538 = vmatprep.subr.mxu0 0.0
    %539 = vmatpush1.msra.mxu0 0.0
    %540 = vmatprep.subr.mxu0 0.0
    %541 = vmatpush1.msra.mxu0 0.0
    %542 = vmatprep.subr.mxu0 0.0
    %543 = vmatpush1.msra.mxu0 0.0
    %544 = vmatprep.subr.mxu0 0.0
    %545 = vmatpush1.msra.mxu0 0.0
    %546 = vmatprep.subr.mxu0 0.0
    %547 = vmatpush1.msra.mxu0 0.0
    %548 = vmatprep.subr.mxu0 0.0
    %549 = vmatpush1.msra.mxu0 0.0
    %550 = vmatprep.subr.mxu0 0.0
    %551 = vmatpush1.msra.mxu0 0.0
    %552 = vmatprep.subr.mxu0 0.0
    %553 = vmatpush1.msra.mxu0 0.0
    %554 = vmatprep.subr.mxu0 0.0
    %555 = vmatpush1.msra.mxu0 0.0
    %556 = vmatprep.subr.mxu0 0.0
    %557 = vmatpush1.msra.mxu0 0.0
    %558 = vmatprep.subr.mxu0 0.0
    %559 = vmatpush1.msra.mxu0 0.0
    %560 = vmatprep.subr.mxu0 0.0
    %561 = vmatpush1.msra.mxu0 0.0
    %562 = vmatprep.subr.mxu0 0.0
    %563 = vmatpush1.msra.mxu0 0.0
    %564 = vmatprep.subr.mxu0 0.0
    %565 = vmatpush1.msra.mxu0 0.0
    %566 = vmatprep.subr.mxu0 0.0
    %567 = vmatpush1.msra.mxu0 0.0
    %568 = vmatprep.subr.mxu0 0.0
    %569 = vmatpush1.msra.mxu0 0.0
    %570 = vmatprep.subr.mxu0 0.0
    %571 = vmatpush1.msra.mxu0 0.0
    %572 = vmatprep.subr.mxu0 0.0
    %573 = vmatpush1.msra.mxu0 0.0
    %574 = vmatprep.mubr.f32.mxu0 0.0
    %575 = vmatmul.mubr.f32.gmra.mrb[0].mxu0 %v508
    %v576 = vpop.f32.mrb[0].mxu0
    %v577 = vadd.f32 %v504, %v576
    %v578 = vpop.f32.mrb[0].mxu0
    %579 = vdwg.mxu0
    %580 = vst [vmem:[#allocation2] sm:$0x3] %v577
    // Predicated region
    $region22: #{tpu_custom_call.1} parent=1 // pred_check
      _
    $region23: #{tpu_custom_call.1} parent=1 // pred_check_branch
      %582 = sbr.rel (0) target = $region25
    $region24: #{tpu_custom_call.1} parent=1 // pred_region
      %s584 = ssub.s32 32, 32
      %585 = vsyncadd [#allocation3], %s584
      %s587 = sshll.u32 [#allocation2], 4
      %s588 = int_to_ptr.vmem [resolvable:$true] %s587
      %590 = dma.vmem_to_hbm [thread:$0]  %s588, 32, %s5, [#allocation3]
    $region25: #{tpu_custom_call.1} parent=1 // pred_fallthru
      _
    // Predicated region
    $region26: #{tpu_custom_call.1} parent=1 // pred_check
      _
    $region27: #{tpu_custom_call.1} parent=1 // pred_check_branch
      %592 = sbr.rel (0) target = $region29
    $region28: #{tpu_custom_call.1} parent=1 // pred_region
      %593 = dma.done [#allocation3], 32
    $region29: #{tpu_custom_call.1} parent=1 // pred_fallthru
      _
    %594 = vsyncpa [#allocation3], 1

</llo_original>
